<compile_context>
chip_gen: v6e
topology: v6e:2x2x1
jax: 0.10.0
libtpu: 0.0.40
codegen_flags: <defaults>
</compile_context>

<pallas_src>
import jax
import jax.numpy as jnp
from jax import lax
from jax.experimental import pallas as pl
from jax.experimental.pallas import tpu as pltpu

LEAKY_SLOPE = 0.2


def _round_up(v, m):
    return ((v + m - 1) // m) * m


def _round_down(v, m):
    return (v // m) * m


def _make_lrec_kernel(chunk, n_chunks):
    """Builds the per-(batch, s_outer, s_inner) kernel closed over chunking.

    Refs seen by the kernel:
      x_ref, xr_ref : (C_in, TILE_S)   lane-dense NCHW tiles (spatial on lanes)
      w_ref         : (C_feat, C_in)   full transposed 1x1-conv weight, resident
      b_ref         : (C_feat, 1)      full bias (f32), resident
      out_ref       : (C_feat, 128)    per-(batch, s_outer) partial-sum block,
                                       resident across the s_inner axis
    """

    def kernel(x_ref, xr_ref, w_ref, b_ref, out_ref):
        si = pl.program_id(2)
        c_feat = out_ref.shape[0]

        w = w_ref[...]
        b = b_ref[...]  # (c_feat, 1) — broadcast over lanes in the adds below

        def chunk_body(k, acc):
            off = pl.multiple_of(k * chunk, chunk)
            xs = x_ref[:, pl.ds(off, chunk)]
            xrs = xr_ref[:, pl.ds(off, chunk)]
            # Two small-K MXU dots; everything downstream stays in vregs.
            fx = jnp.dot(w, xs, preferred_element_type=jnp.float32) + b
            fx = jnp.where(fx > 0, fx, LEAKY_SLOPE * fx)
            fr = jnp.dot(w, xrs, preferred_element_type=jnp.float32) + b
            fr = jnp.where(fr > 0, fr, LEAKY_SLOPE * fr)
            d = fx - fr
            dd = d * d
            # Lane-aligned 128-wide folds: relayout-free, pure VPU adds.
            for j in range(chunk // 128):
                acc = acc + dd[:, j * 128:(j + 1) * 128]
            return acc

        acc0 = jnp.zeros((c_feat, 128), jnp.float32)
        if n_chunks == 1:
            acc = chunk_body(0, acc0)
        else:
            acc = lax.fori_loop(0, n_chunks, chunk_body, acc0, unroll=2)

        @pl.when(si == 0)
        def _():
            out_ref[...] = acc

        @pl.when(si != 0)
        def _():
            out_ref[...] += acc

    return kernel


def lrec_loss(x_nchw, x_rec_nchw, w, b, *, max_tile_s=256 * 1024):
    """-||F(x) - F(x_rec)||_F / N, with F = LeakyReLU(1x1 conv)."""
    n, c_in, h, wd = x_nchw.shape
    assert x_rec_nchw.shape == x_nchw.shape
    c_feat = w.shape[1]
    spatial = h * wd

    # NCHW consumed natively: (N, C, H, W) -> (N, C, H*W) is a free reshape;
    # the long spatial axis lands on the lane dimension.
    x3 = x_nchw.reshape(n, c_in, spatial)
    xr3 = x_rec_nchw.reshape(n, c_in, spatial)

    itemsize = jnp.dtype(x3.dtype).itemsize
    # Keep native activation dtype; tiny weight cast to match, f32 accumulate.
    w_t = jnp.asarray(w).T.astype(x3.dtype)                 # (C_feat, C_in)
    b2 = jnp.asarray(b).reshape(c_feat, 1).astype(jnp.float32)
    w_bytes = w_t.size * jnp.dtype(w_t.dtype).itemsize

    # --- lane chunk for the vreg-resident inner chain ----------------------
    # Keep c_feat * chunk * 4B (one f32 feature chunk) around <= 64 KiB so the
    # whole bias/LeakyReLU/diff/square chain fits in registers (~40 vregs).
    chunk = max(128, min(512, _round_down(max(128, 16384 // max(c_feat, 1)), 128)))
    chunk = min(chunk, _round_up(spatial, 128))

    # --- per-generation VMEM budget -> tile size ----------------------------
    try:
        vmem_cap = int(pltpu.get_tpu_info().vmem_capacity_bytes)
    except Exception:  # pragma: no cover - conservative fallback (v7x = 64 MiB)
        vmem_cap = 64 * 1024 * 1024
    fixed_bytes = w_bytes + c_feat * 4 + 2 * c_feat * 128 * 4 + (2 << 20)
    budget = int(0.75 * vmem_cap)                            # ~25% headroom
    tile_cap = (budget - fixed_bytes) // (4 * c_in * itemsize)  # 2 in x 2 bufs
    tile_cap = max(chunk, _round_down(int(tile_cap), chunk))
    tile_cap = min(tile_cap, max(chunk, _round_down(max_tile_s, chunk)))

    # Pad spatial UP to a friendly multiple (no downward divisor search).
    sp = _round_up(spatial, chunk)
    n_tiles = -(-sp // tile_cap)                             # ceil
    if n_tiles > 1 and n_tiles % 2:
        n_tiles += 1                  # even tile count -> 2-way parallel split
    tile_s = _round_up(-(-sp // n_tiles), chunk)             # <= tile_cap
    sp_pad = tile_s * n_tiles
    s_outer = 2 if n_tiles > 1 else 1
    s_inner = n_tiles // s_outer

    # Identical zero pads on both inputs give F(x) == F(x_rec) on the padded
    # columns (bias included), so the loss is unchanged.
    if sp_pad != spatial:
        pad = sp_pad - spatial
        x3 = jnp.pad(x3, ((0, 0), (0, 0), (0, pad)))
        xr3 = jnp.pad(xr3, ((0, 0), (0, 0), (0, pad)))

    n_chunks = tile_s // chunk
    kernel = _make_lrec_kernel(chunk, n_chunks)

    grid = (n, s_outer, s_inner)
    spatial_block = lambda i, so, si: (i, 0, so * s_inner + si)

    bytes_accessed = (2 * n * c_in * sp_pad * itemsize       # both inputs
                      + w_bytes + c_feat * 4                 # weight + bias
                      + n * s_outer * c_feat * 128 * 4)      # partial sums
    flops = 4 * n * sp_pad * c_in * c_feat                   # two dots

    need = 4 * c_in * tile_s * itemsize + fixed_bytes
    vmem_limit = int(max(32 * 1024 * 1024,
                         min(int(0.85 * vmem_cap), need + (8 << 20))))

    partials = pl.pallas_call(
        kernel,
        out_shape=jax.ShapeDtypeStruct((n, s_outer, c_feat, 128), jnp.float32),
        grid_spec=pltpu.PrefetchScalarGridSpec(
            num_scalar_prefetch=0,
            grid=grid,
            in_specs=[
                pl.BlockSpec((None, c_in, tile_s), spatial_block),
                pl.BlockSpec((None, c_in, tile_s), spatial_block),
                pl.BlockSpec((c_feat, c_in), lambda i, so, si: (0, 0)),
                pl.BlockSpec((c_feat, 1), lambda i, so, si: (0, 0)),
            ],
            out_specs=pl.BlockSpec((None, None, c_feat, 128),
                                   lambda i, so, si: (i, so, 0, 0)),
        ),
        compiler_params=pltpu.CompilerParams(
            # batch + spatial-superblock are race-free parallel axes (megacore
            # split on v7x even for N=1); innermost spatial is the reduction.
            dimension_semantics=("parallel", "parallel", "arbitrary"),
            vmem_limit_bytes=vmem_limit,
        ),
        cost_estimate=pl.CostEstimate(
            flops=flops, transcendentals=0, bytes_accessed=bytes_accessed),
    )(x3, xr3, w_t, b2)

    # Scalar epilogue: final cross-lane sum, Frobenius norm, negate, / N.
    ss = jnp.sum(partials.astype(jnp.float32))
    return -jnp.sqrt(ss) / n


def lrec_reference(x_nchw, x_rec_nchw, w, b):
    """Pure-JAX reference for correctness."""
    def feat(v):
        n, c, h, wd = v.shape
        v2 = jnp.transpose(v, (0, 2, 3, 1)).reshape(-1, c).astype(jnp.float32)
        f = v2 @ w.astype(jnp.float32) + b.reshape(1, -1).astype(jnp.float32)
        return jnp.where(f > 0, f, LEAKY_SLOPE * f)

    d = feat(x_nchw) - feat(x_rec_nchw)
    return -jnp.sqrt(jnp.sum(d * d)) / x_nchw.shape[0]


if __name__ == "__main__":
    key = jax.random.PRNGKey(0)
    k1, k2, k3, k4 = jax.random.split(key, 4)

    N, C, H, W = 2, 4, 16, 16       # small NCHW input, as in the PyTorch module
    C_FEAT = 32                     # synthetic discriminator feature channels

    x = jax.random.normal(k1, (N, C, H, W), dtype=jnp.float32)
    x_rec = x + 0.1 * jax.random.normal(k2, (N, C, H, W), dtype=jnp.float32)

    # Deterministic synthetic d_i parameters (1x1 conv weight + bias).
    w = 0.1 * jax.random.normal(k3, (C, C_FEAT), dtype=jnp.float32)
    b = 0.01 * jax.random.normal(k4, (C_FEAT,), dtype=jnp.float32)

    loss = lrec_loss(x, x_rec, w, b)
    loss = jax.block_until_ready(loss)

    ref = lrec_reference(x, x_rec, w, b)
    assert jnp.allclose(loss, ref, rtol=1e-5, atol=1e-5), (loss, ref)

    print("KERNEL_OK")
</pallas_src>

<mosaic_0001>
module attributes {stable_mosaic.version = 11 : i64} {
  func.func @kernel(%arg0: i32, %arg1: i32, %arg2: i32, %arg3: memref<1x4x256xf32, #tpu.memory_space<vmem>>, %arg4: memref<1x4x256xf32, #tpu.memory_space<vmem>>, %arg5: memref<32x4xf32, #tpu.memory_space<vmem>>, %arg6: memref<32x1xf32, #tpu.memory_space<vmem>>, %arg7: memref<1x1x32x128xf32, #tpu.memory_space<vmem>>) attributes {dimension_semantics = [#tpu.dimension_semantics<parallel>, #tpu.dimension_semantics<parallel>, #tpu.dimension_semantics<arbitrary>], iteration_bounds = array<i64: 2, 1, 1>, scalar_prefetch = 0 : i64, scratch_operands = 0 : i64, tpu.core_type = #tpu.core_type<tc>, window_params = [{transform_indices = @transform_0, window_bounds = array<i64: 1, 4, 256>}, {transform_indices = @transform_1, window_bounds = array<i64: 1, 4, 256>}, {pipeline_mode = #tpu.pipeline_mode<synchronous>, transform_indices = @transform_2, window_bounds = array<i64: 32, 4>}, {pipeline_mode = #tpu.pipeline_mode<synchronous>, transform_indices = @transform_3, window_bounds = array<i64: 32, 1>}, {transform_indices = @transform_4, window_bounds = array<i64: 1, 1, 32, 128>}]} {
    %c0 = arith.constant 0 : index
    %c0_0 = arith.constant 0 : index
    %0 = vector.load %arg5[%c0, %c0_0] : memref<32x4xf32, #tpu.memory_space<vmem>>, vector<32x4xf32>
    %c0_1 = arith.constant 0 : index
    %c0_2 = arith.constant 0 : index
    %1 = vector.load %arg6[%c0_1, %c0_2] : memref<32x1xf32, #tpu.memory_space<vmem>>, vector<32x1xf32>
    %cst = arith.constant 0.000000e+00 : f32
    %2 = vector.broadcast %cst : f32 to vector<32x128xf32>
    %c0_i32 = arith.constant 0 : i32
    %3 = tpu.assume_multiple %c0_i32, 256 : i32
    %c0_3 = arith.constant 0 : index
    %c0_4 = arith.constant 0 : index
    %4 = arith.index_cast %3 : i32 to index
    %5 = vector.load %arg3[%c0_3, %c0_4, %4] : memref<1x4x256xf32, #tpu.memory_space<vmem>>, vector<1x4x256xf32>
    %6 = vector.shape_cast %5 : vector<1x4x256xf32> to vector<4x256xf32>
    %c0_5 = arith.constant 0 : index
    %c0_6 = arith.constant 0 : index
    %7 = arith.index_cast %3 : i32 to index
    %8 = vector.load %arg4[%c0_5, %c0_6, %7] : memref<1x4x256xf32, #tpu.memory_space<vmem>>, vector<1x4x256xf32>
    %9 = vector.shape_cast %8 : vector<1x4x256xf32> to vector<4x256xf32>
    %cst_7 = arith.constant dense<0.000000e+00> : vector<32x256xf32>
    %10 = tpu.matmul %0, %6, %cst_7 {dimension_numbers = #tpu.dot_dimension_numbers<[1], [0], [0], [1], [0, 0, 1, 1], [], []>} : vector<32x4xf32>, vector<4x256xf32>, vector<32x256xf32> -> vector<32x256xf32>
    %11 = vector.broadcast %1 : vector<32x1xf32> to vector<32x256xf32>
    %12 = arith.addf %10, %11 : vector<32x256xf32>
    %cst_8 = arith.constant 0.000000e+00 : f32
    %13 = vector.broadcast %cst_8 : f32 to vector<32x256xf32>
    %14 = arith.cmpf ogt, %12, %13 : vector<32x256xf32>
    %cst_9 = arith.constant 2.000000e-01 : f32
    %15 = vector.broadcast %cst_9 : f32 to vector<32x256xf32>
    %16 = arith.mulf %15, %12 : vector<32x256xf32>
    %17 = arith.select %14, %12, %16 : vector<32x256xi1>, vector<32x256xf32>
    %cst_10 = arith.constant dense<0.000000e+00> : vector<32x256xf32>
    %18 = tpu.matmul %0, %9, %cst_10 {dimension_numbers = #tpu.dot_dimension_numbers<[1], [0], [0], [1], [0, 0, 1, 1], [], []>} : vector<32x4xf32>, vector<4x256xf32>, vector<32x256xf32> -> vector<32x256xf32>
    %19 = vector.broadcast %1 : vector<32x1xf32> to vector<32x256xf32>
    %20 = arith.addf %18, %19 : vector<32x256xf32>
    %cst_11 = arith.constant 0.000000e+00 : f32
    %21 = vector.broadcast %cst_11 : f32 to vector<32x256xf32>
    %22 = arith.cmpf ogt, %20, %21 : vector<32x256xf32>
    %cst_12 = arith.constant 2.000000e-01 : f32
    %23 = vector.broadcast %cst_12 : f32 to vector<32x256xf32>
    %24 = arith.mulf %23, %20 : vector<32x256xf32>
    %25 = arith.select %22, %20, %24 : vector<32x256xi1>, vector<32x256xf32>
    %26 = arith.subf %17, %25 : vector<32x256xf32>
    %27 = arith.mulf %26, %26 : vector<32x256xf32>
    %28 = vector.extract_strided_slice %27 {offsets = [0, 0], sizes = [32, 128], strides = [1, 1]} : vector<32x256xf32> to vector<32x128xf32>
    %29 = arith.addf %2, %28 : vector<32x128xf32>
    %30 = vector.extract_strided_slice %27 {offsets = [0, 128], sizes = [32, 128], strides = [1, 1]} : vector<32x256xf32> to vector<32x128xf32>
    %31 = arith.addf %29, %30 : vector<32x128xf32>
    %c0_i32_13 = arith.constant 0 : i32
    %32 = arith.cmpi eq, %arg2, %c0_i32_13 : i32
    %33 = arith.extui %32 : i1 to i32
    %c0_i32_14 = arith.constant 0 : i32
    %34 = arith.cmpi ne, %33, %c0_i32_14 : i32
    scf.if %34 {
      %c0_17 = arith.constant 0 : index
      %c0_18 = arith.constant 0 : index
      %c0_19 = arith.constant 0 : index
      %c0_20 = arith.constant 0 : index
      %38 = vector.load %arg7[%c0_17, %c0_18, %c0_19, %c0_20] : memref<1x1x32x128xf32, #tpu.memory_space<vmem>>, vector<1x1x32x128xf32>
      %39 = vector.shape_cast %38 : vector<1x1x32x128xf32> to vector<32x128xf32>
      %40 = vector.shape_cast %31 : vector<32x128xf32> to vector<1x1x32x128xf32>
      tpu.vector_store %arg7[%c0_17, %c0_18, %c0_19, %c0_20], %40 {strides = array<i32>} : memref<1x1x32x128xf32, #tpu.memory_space<vmem>>, vector<1x1x32x128xf32>,
    } else {
    }
    %c0_i32_15 = arith.constant 0 : i32
    %35 = arith.cmpi ne, %arg2, %c0_i32_15 : i32
    %36 = arith.extui %35 : i1 to i32
    %c0_i32_16 = arith.constant 0 : i32
    %37 = arith.cmpi ne, %36, %c0_i32_16 : i32
    scf.if %37 {
      %c0_17 = arith.constant 0 : index
      %c0_18 = arith.constant 0 : index
      %c0_19 = arith.constant 0 : index
      %c0_20 = arith.constant 0 : index
      %38 = vector.load %arg7[%c0_17, %c0_18, %c0_19, %c0_20] : memref<1x1x32x128xf32, #tpu.memory_space<vmem>>, vector<1x1x32x128xf32>
      %39 = vector.shape_cast %38 : vector<1x1x32x128xf32> to vector<32x128xf32>
      %40 = arith.addf %39, %31 : vector<32x128xf32>
      %c0_21 = arith.constant 0 : index
      %c0_22 = arith.constant 0 : index
      %c0_23 = arith.constant 0 : index
      %c0_24 = arith.constant 0 : index
      %41 = vector.load %arg7[%c0_21, %c0_22, %c0_23, %c0_24] : memref<1x1x32x128xf32, #tpu.memory_space<vmem>>, vector<1x1x32x128xf32>
      %42 = vector.shape_cast %41 : vector<1x1x32x128xf32> to vector<32x128xf32>
      %43 = vector.shape_cast %40 : vector<32x128xf32> to vector<1x1x32x128xf32>
      tpu.vector_store %arg7[%c0_21, %c0_22, %c0_23, %c0_24], %43 {strides = array<i32>} : memref<1x1x32x128xf32, #tpu.memory_space<vmem>>, vector<1x1x32x128xf32>,
    } else {
    }
    return
  }
  func.func @transform_0(%arg0: i32, %arg1: i32, %arg2: i32) -> (i32, i32, i32) {
    %c1_i32 = arith.constant 1 : i32
    %0 = arith.muli %arg1, %c1_i32 : i32
    %1 = arith.addi %0, %arg2 : i32
    %c0_i32 = arith.constant 0 : i32
    %c0_i32_0 = arith.constant 0 : i32
    return %arg0, %c0_i32, %1 : i32, i32, i32
  }
  func.func @transform_1(%arg0: i32, %arg1: i32, %arg2: i32) -> (i32, i32, i32) {
    %c1_i32 = arith.constant 1 : i32
    %0 = arith.muli %arg1, %c1_i32 : i32
    %1 = arith.addi %0, %arg2 : i32
    %c0_i32 = arith.constant 0 : i32
    %c0_i32_0 = arith.constant 0 : i32
    return %arg0, %c0_i32, %1 : i32, i32, i32
  }
  func.func @transform_2(%arg0: i32, %arg1: i32, %arg2: i32) -> (i32, i32) {
    %c0_i32 = arith.constant 0 : i32
    %c0_i32_0 = arith.constant 0 : i32
    %c0_i32_1 = arith.constant 0 : i32
    return %c0_i32, %c0_i32_0 : i32, i32
  }
  func.func @transform_3(%arg0: i32, %arg1: i32, %arg2: i32) -> (i32, i32) {
    %c0_i32 = arith.constant 0 : i32
    %c0_i32_0 = arith.constant 0 : i32
    %c0_i32_1 = arith.constant 0 : i32
    return %c0_i32, %c0_i32_0 : i32, i32
  }
  func.func @transform_4(%arg0: i32, %arg1: i32, %arg2: i32) -> (i32, i32, i32, i32) {
    %c0_i32 = arith.constant 0 : i32
    %c0_i32_0 = arith.constant 0 : i32
    %c0_i32_1 = arith.constant 0 : i32
    return %arg0, %arg1, %c0_i32, %c0_i32_0 : i32, i32, i32, i32
  }
}

</mosaic_0001>

<llo_original>
// kernel: tpu_custom_call.1
$region0: #{tpu_custom_call.1}
  #allocation0 [shape = 'u32[]', space=smem, size = 0x4, offset = 0x4, fixed_abs, tag = 'smem constant byte address 0x4 - core index']
  #allocation1 [shape = 'u32[144,128]{1,0:T(1,128)}', space=vmem, size = 0x12000, scoped, tag = 'internal scratch']
  %s0 = inlined_call_operand.vmem [shape: f32[2,4,256], index: 0, kind: input, shape index: {}]
  %s1 = inlined_call_operand.vmem [shape: f32[2,4,256], index: 1, kind: input, shape index: {}]
  %s2 = inlined_call_operand.vmem [shape: f32[32,4], index: 2, kind: input, shape index: {}]
  %s3 = inlined_call_operand.vmem [shape: f32[32,1], index: 3, kind: input, shape index: {}]
  %s4 = inlined_call_operand.hbm [shape: f32[2,1,32,128], index: 4, kind: output, shape index: {}]
  %s5 = sld [smem:[#allocation0]]
  $region57: #{tpu_custom_call.1} parent=0
    _
  %s7 = ssub.s32 1, %s5
  %s8 = scalar_select 0, %s7, %s5
  $region1: #{tpu_custom_call.1} parent=0
    #allocation2 [shape = 'u8[32768]{0}', space=vmem, size = 0x8000, scoped, tag = 'output window, operand 0']
    #allocation3 [shape = 's32[2]{0}', space=sflag, size = 0x8, scoped, tag = 'scoped memory for tpu_custom_call.1']
    %9 = vsyncpa [#allocation3], 0
    %s10 = scalar_lea.sflag [#allocation3], 1
    %11 = vsyncpa %s10, 0
    loop: start=0, step=1, limit=4
    $region2: #{tpu_custom_call.1} parent=1 // loop_pre_header
      _
    $region3: #{tpu_custom_call.1} parent=1 // loop_header
      %s13 = sphi 0, %s17
      %p14 = scmp.ge.s32.totalorder %s13, 4
      %s20 = sphi 0, %s39
      %s21 = sphi 0, %s35
      %s22 = sphi 0, %s31
      %s23 = sphi 0, %s20
      %s24 = sphi 0, %s21
      %s25 = sphi 0, %s22
      %s26 = sphi 0, %s23
      %s27 = sphi 0, %s24
      %s28 = sphi 0, %s25
      %s46 = sphi 0, %s48
      %s49 = sphi 0, %s46
      %s50 = sphi 0, %s49
      %s66 = sphi 0, %s50
      %s76 = sphi 0, %s78
      %s79 = sphi 0, %s76
      %s80 = sphi 0, %s79
      %s96 = sphi 0, %s80
      %s100 = sphi 0, %s100
      %s102 = sphi 0, %s100
      %s103 = sphi 0, %s102
      %s117 = sphi 0, %s103
      %s121 = sphi 0, %s121
      %s123 = sphi 0, %s121
      %s124 = sphi 0, %s123
      %s138 = sphi 0, %s124
      %s146 = sphi 0, %s148
      %s149 = sphi 0, %s146
      %s150 = sphi 0, %s149
      %s166 = sphi 0, %s150
    $region4: #{tpu_custom_call.1} parent=1 // loop_header_branch
      %16 = sbr.rel (%p14) target = $region8
    $region5: #{tpu_custom_call.1} parent=1 // loop_body
      %s18 = ssub.s32 %s13, 1
      %s19 = ssub.s32 %s13, 2
      %s29 = sadd.s32 1, %s22
      %p30 = scmp.ge.s32.totalorder %s29, 1
      %s31 = scalar_select %p30, 0, %s29
      %s32 = sadd.s32 1, %s21
      %s33 = scalar_select %p30, %s32, %s21
      %p34 = scmp.ge.s32.totalorder %s33, 1
      %s35 = scalar_select %p34, 0, %s33
      %s36 = sadd.s32 1, %s20
      %s37 = scalar_select %p34, %s36, %s20
      %p38 = scmp.ge.s32.totalorder %s37, 2
      %s39 = scalar_select %p38, 0, %s37
      %s40 = sadd.s32 %s21, %s22
      %s41 = sadd.s32 %s35, %s31
      %s42 = ssub.s32 %s20, %s39
      %s43 = ssub.s32 %s40, %s41
      %s44 = sor.u32 %s42, %s43
      %p45 = scmp.eq.s32.totalorder %s44, 0
      %s47 = sadd.s32 %s46, 1
      %s48 = scalar_select %p45, %s46, %s47
      %p51 = pneg %p45
      %p52 = scmp.eq.s32.totalorder %s13, 1
      %p53 = por %p51, %p52
      %p54 = scmp.ne.s32.totalorder %s46, %s49
      %p55 = scmp.eq.s32.totalorder %s13, 0
      %p56 = por %p54, %p55
      %p57 = scmp.ne.s32.totalorder %s46, %s49
      %p58 = scmp.eq.s32.totalorder %s18, 1
      %p59 = por %p57, %p58
      %p60 = scmp.ne.s32.totalorder %s49, %s50
      %p61 = scmp.eq.s32.totalorder %s18, 0
      %p62 = por %p60, %p61
      %p63 = scmp.ne.s32.totalorder %s49, %s50
      %p64 = scmp.eq.s32.totalorder %s19, 1
      %p65 = por %p63, %p64
      %p67 = scmp.ne.s32.totalorder %s50, %s66
      %p68 = scmp.eq.s32.totalorder %s19, 0
      %p69 = por %p67, %p68
      %s70 = sadd.s32 %s21, %s22
      %s71 = sadd.s32 %s35, %s31
      %s72 = ssub.s32 %s20, %s39
      %s73 = ssub.s32 %s70, %s71
      %s74 = sor.u32 %s72, %s73
      %p75 = scmp.eq.s32.totalorder %s74, 0
      %s77 = sadd.s32 %s76, 1
      %s78 = scalar_select %p75, %s76, %s77
      %p81 = pneg %p75
      %p82 = scmp.eq.s32.totalorder %s13, 1
      %p83 = por %p81, %p82
      %p84 = scmp.ne.s32.totalorder %s76, %s79
      %p85 = scmp.eq.s32.totalorder %s13, 0
      %p86 = por %p84, %p85
      %p87 = scmp.ne.s32.totalorder %s76, %s79
      %p88 = scmp.eq.s32.totalorder %s18, 1
      %p89 = por %p87, %p88
      %p90 = scmp.ne.s32.totalorder %s79, %s80
      %p91 = scmp.eq.s32.totalorder %s18, 0
      %p92 = por %p90, %p91
      %p93 = scmp.ne.s32.totalorder %s79, %s80
      %p94 = scmp.eq.s32.totalorder %s19, 1
      %p95 = por %p93, %p94
      %p97 = scmp.ne.s32.totalorder %s80, %s96
      %p98 = scmp.eq.s32.totalorder %s19, 0
      %p99 = por %p97, %p98
      %s101 = sadd.s32 %s100, 1
      %p104 = scmp.eq.s32.totalorder %s13, 1
      %p105 = scmp.ne.s32.totalorder %s100, %s102
      %p106 = scmp.eq.s32.totalorder %s13, 0
      %p107 = por %p105, %p106
      %p108 = scmp.ne.s32.totalorder %s100, %s102
      %p109 = scmp.eq.s32.totalorder %s18, 1
      %p110 = por %p108, %p109
      %p111 = scmp.ne.s32.totalorder %s102, %s103
      %p112 = scmp.eq.s32.totalorder %s18, 0
      %p113 = por %p111, %p112
      %p114 = scmp.ne.s32.totalorder %s102, %s103
      %p115 = scmp.eq.s32.totalorder %s19, 1
      %p116 = por %p114, %p115
      %p118 = scmp.ne.s32.totalorder %s103, %s117
      %p119 = scmp.eq.s32.totalorder %s19, 0
      %p120 = por %p118, %p119
      %s122 = sadd.s32 %s121, 1
      %p125 = scmp.eq.s32.totalorder %s13, 1
      %p126 = scmp.ne.s32.totalorder %s121, %s123
      %p127 = scmp.eq.s32.totalorder %s13, 0
      %p128 = por %p126, %p127
      %p129 = scmp.ne.s32.totalorder %s121, %s123
      %p130 = scmp.eq.s32.totalorder %s18, 1
      %p131 = por %p129, %p130
      %p132 = scmp.ne.s32.totalorder %s123, %s124
      %p133 = scmp.eq.s32.totalorder %s18, 0
      %p134 = por %p132, %p133
      %p135 = scmp.ne.s32.totalorder %s123, %s124
      %p136 = scmp.eq.s32.totalorder %s19, 1
      %p137 = por %p135, %p136
      %p139 = scmp.ne.s32.totalorder %s124, %s138
      %p140 = scmp.eq.s32.totalorder %s19, 0
      %p141 = por %p139, %p140
      %s142 = ssub.s32 %s20, %s39
      %s143 = ssub.s32 %s21, %s35
      %s144 = sor.u32 %s142, %s143
      %p145 = scmp.eq.s32.totalorder %s144, 0
      %s147 = sadd.s32 %s146, 1
      %s148 = scalar_select %p145, %s146, %s147
      %p151 = pneg %p145
      %p152 = scmp.eq.s32.totalorder %s13, 1
      %p153 = por %p151, %p152
      %p154 = scmp.ne.s32.totalorder %s146, %s149
      %p155 = scmp.eq.s32.totalorder %s13, 0
      %p156 = por %p154, %p155
      %p157 = scmp.ne.s32.totalorder %s146, %s149
      %p158 = scmp.eq.s32.totalorder %s18, 1
      %p159 = por %p157, %p158
      %p160 = scmp.ne.s32.totalorder %s149, %s150
      %p161 = scmp.eq.s32.totalorder %s18, 0
      %p162 = por %p160, %p161
      %p163 = scmp.ne.s32.totalorder %s149, %s150
      %p164 = scmp.eq.s32.totalorder %s19, 1
      %p165 = por %p163, %p164
      %p167 = scmp.ne.s32.totalorder %s150, %s166
      %p168 = scmp.eq.s32.totalorder %s19, 0
      %p169 = por %p167, %p168
      %p170 = scmp.le.s32.totalorder 1, %s13
      %p171 = scmp.lt.s32.totalorder %s13, 3
      %p172 = pnand %p170, %p171
      %p173 = pneg %p172
      // Predicated region
      $region9: #{tpu_custom_call.1} parent=5 // pred_check
        _
      $region10: #{tpu_custom_call.1} parent=5 // pred_check_branch
        %175 = sbr.rel (%p172) target = $region12
      $region11: #{tpu_custom_call.1} parent=5 // pred_region
        %s176 = ssub.s32 %s13, 1
        // Predicated region
        $region13: #{tpu_custom_call.1} parent=11 // pred_check
          %p177 = pneg %p113
        $region14: #{tpu_custom_call.1} parent=11 // pred_check_branch
          %179 = sbr.rel (%p177) target = $region16
        $region15: #{tpu_custom_call.1} parent=11 // pred_region
          _
        $region16: #{tpu_custom_call.1} parent=11 // pred_fallthru
          _
        // Predicated region
        $region17: #{tpu_custom_call.1} parent=11 // pred_check
          %p180 = pneg %p134
        $region18: #{tpu_custom_call.1} parent=11 // pred_check_branch
          %182 = sbr.rel (%p180) target = $region20
        $region19: #{tpu_custom_call.1} parent=11 // pred_region
          _
        $region20: #{tpu_custom_call.1} parent=11 // pred_fallthru
          _
      $region12: #{tpu_custom_call.1} parent=5 // pred_fallthru
        _
      %p183 = scmp.lt.s32.totalorder %s13, 2
      // Predicated region
      $region21: #{tpu_custom_call.1} parent=5 // pred_check
        %p184 = pneg %p183
      $region22: #{tpu_custom_call.1} parent=5 // pred_check_branch
        %186 = sbr.rel (%p184) target = $region24
      $region23: #{tpu_custom_call.1} parent=5 // pred_region
        // Predicated region
        $region25: #{tpu_custom_call.1} parent=23 // pred_check
          %p187 = pneg %p56
        $region26: #{tpu_custom_call.1} parent=23 // pred_check_branch
          %189 = sbr.rel (%p187) target = $region28
        $region27: #{tpu_custom_call.1} parent=23 // pred_region
          %s190 = sadd.s32 %s21, %s22
          %s191 = smul.u32 2, %s190
          %p192 = scmp.lt.s32.totalorder %s20, 1
          %s193 = scalar_select %p192, %s20, 1
          %p194 = scmp.lt.s32.totalorder %s191, 1
          %s195 = scalar_select %p194, %s191, 1
          %s196 = smul.addr %s193, 2
          %s197 = sadd.s32 %s195, %s196
          %s198 = smul.addr %s197, 4
          %s199 = scalar_lea.vmem %s0, %s198
          %s200 = sadd.s32 %s21, %s22
          %s201 = smul.u32 2, %s200
        $region28: #{tpu_custom_call.1} parent=23 // pred_fallthru
          _
        // Predicated region
        $region29: #{tpu_custom_call.1} parent=23 // pred_check
          %p202 = pneg %p86
        $region30: #{tpu_custom_call.1} parent=23 // pred_check_branch
          %204 = sbr.rel (%p202) target = $region32
        $region31: #{tpu_custom_call.1} parent=23 // pred_region
          %s205 = sadd.s32 %s21, %s22
          %s206 = smul.u32 2, %s205
          %p207 = scmp.lt.s32.totalorder %s20, 1
          %s208 = scalar_select %p207, %s20, 1
          %p209 = scmp.lt.s32.totalorder %s206, 1
          %s210 = scalar_select %p209, %s206, 1
          %s211 = smul.addr %s208, 2
          %s212 = sadd.s32 %s210, %s211
          %s213 = smul.addr %s212, 4
          %s214 = scalar_lea.vmem %s1, %s213
          %s215 = sadd.s32 %s21, %s22
          %s216 = smul.u32 2, %s215
        $region32: #{tpu_custom_call.1} parent=23 // pred_fallthru
          _
      $region24: #{tpu_custom_call.1} parent=5 // pred_fallthru
        _
      %p217 = scmp.le.s32.totalorder 1, %s13
      %p218 = scmp.lt.s32.totalorder %s13, 3
      %p219 = pnand %p217, %p218
      %p220 = pneg %p219
      // Predicated region
      $region33: #{tpu_custom_call.1} parent=5 // pred_check
        _
      $region34: #{tpu_custom_call.1} parent=5 // pred_check_branch
        %222 = sbr.rel (%p219) target = $region36
      $region35: #{tpu_custom_call.1} parent=5 // pred_region
        %s223 = ssub.s32 %s13, 1
        %s224 = sadd.s32 %s24, %s25
        %s225 = smul.u32 2, %s224
        %p226 = scmp.lt.s32.totalorder %s23, 1
        %s227 = scalar_select %p226, %s23, 1
        %p228 = scmp.lt.s32.totalorder %s225, 1
        %s229 = scalar_select %p228, %s225, 1
        %s230 = smul.addr %s227, 2
        %s231 = sadd.s32 %s229, %s230
        %s232 = smul.addr %s231, 4
        %s233 = scalar_lea.vmem %s0, %s232
        %p234 = pneg %p62
        %p235 = pneg %p59
        %s236 = sadd.s32 %s24, %s25
        %s237 = smul.u32 2, %s236
        %p238 = scmp.lt.s32.totalorder %s23, 1
        %s239 = scalar_select %p238, %s23, 1
        %p240 = scmp.lt.s32.totalorder %s237, 1
        %s241 = scalar_select %p240, %s237, 1
        %s242 = smul.addr %s239, 2
        %s243 = sadd.s32 %s241, %s242
        %s244 = smul.addr %s243, 4
        %s245 = scalar_lea.vmem %s1, %s244
        %p246 = pneg %p92
        %p247 = pneg %p89
        %p248 = pneg %p113
        %p249 = pneg %p110
        %p250 = pneg %p134
        %p251 = pneg %p131
        %p252 = pneg %p162
        %p253 = pneg %p159
        %s254 = sand.u32 %s149, 1
        %s255 = scalar_lea.sflag [#allocation3], %s254
        %s256 = sand.u32 %s149, 1
        %s257 = smul.addr %s256, 32
        %s258 = scalar_lea.vmem [#allocation2], %s257
        %s259 = sadd.s32 %s24, %s25
        %s260 = smul.u32 2, %s259
        %p261 = scmp.lt.s32.totalorder %s23, 1
        %s262 = scalar_select %p261, %s23, 1
        %p263 = scmp.lt.s32.totalorder %s260, 1
        %s264 = scalar_select %p263, %s260, 1
        %s265 = smul.addr %s262, 2
        %s266 = sadd.s32 %s264, %s265
        %s267 = smul.addr %s266, 4
        %s268 = scalar_lea.vmem %s0, %s267
        %s269 = sadd.s32 %s24, %s25
        %s270 = smul.u32 2, %s269
        %s271 = sadd.s32 %s24, %s25
        %s272 = smul.u32 2, %s271
        %p273 = scmp.lt.s32.totalorder %s23, 1
        %s274 = scalar_select %p273, %s23, 1
        %p275 = scmp.lt.s32.totalorder %s272, 1
        %s276 = scalar_select %p275, %s272, 1
        %s277 = smul.addr %s274, 2
        %s278 = sadd.s32 %s276, %s277
        %s279 = smul.addr %s278, 4
        %s280 = scalar_lea.vmem %s1, %s279
        %s281 = sadd.s32 %s24, %s25
        %s282 = smul.u32 2, %s281
        %v283 = vld [vmem:[%s2] sm:$0xff]
        %v284 = vld [vmem:[%s2 + $0x8] sm:$0xff]
        %v285 = vld [vmem:[%s2 + $0x10] sm:$0xff]
        %v286 = vld [vmem:[%s2 + $0x18] sm:$0xff]
        %v287 = vld [vmem:[%s3] sm:$0xff]
        %v288 = vld [vmem:[%s3 + $0x8] sm:$0xff]
        %v289 = vld [vmem:[%s3 + $0x10] sm:$0xff]
        %v290 = vld [vmem:[%s3 + $0x18] sm:$0xff]
        %v291 = vld [vmem:[%s268] sm:$0xff]
        %v292 = vld [vmem:[%s280] sm:$0xff]
        %294 = vset.pattern.permute.xlu0 0
        %295 = vperm.xlu0 %294, %v287
        %v296 = vpop.permute.xlu0 %295
        %299 = vset.pattern.permute.xlu0 0
        %300 = vperm.xlu0 %299, %v288
        %v301 = vpop.permute.xlu0 %300
        %304 = vset.pattern.permute.xlu0 0
        %305 = vperm.xlu0 %304, %v289
        %v306 = vpop.permute.xlu0 %305
        %309 = vset.pattern.permute.xlu0 0
        %310 = vperm.xlu0 %309, %v290
        %v311 = vpop.permute.xlu0 %310
        %v314 = vcombine.high %v291, %v291
        %vm315 = vcmask 31744
        %v317 = vsel %vm315, %v283, 0
        %v320 = vsel %vm315, %v284, 0
        %v323 = vsel %vm315, %v285, 0
        %v326 = vsel %vm315, %v286, 0
        %vm328 = vcmask 1043456
        %v329 = vsel %vm328, %v291, 0
        %v331 = vsel %vm328, %v314, 0
        %333 = vmatprep.subr.mxu0 0.0
        %334 = vmatpush1.msra.mxu0 0.0
        %335 = vmatprep.subr.mxu0 0.0
        %336 = vmatpush1.msra.mxu0 0.0
        %337 = vmatprep.subr.mxu0 0.0
        %338 = vmatpush1.msra.mxu0 0.0
        %339 = vmatprep.subr.mxu0 0.0
        %340 = vmatpush1.msra.mxu0 0.0
        %341 = vmatprep.subr.mxu0 0.0
        %342 = vmatpush1.msra.mxu0 0.0
        %343 = vmatprep.subr.mxu0 0.0
        %344 = vmatpush1.msra.mxu0 0.0
        %345 = vmatprep.subr.mxu0 0.0
        %346 = vmatpush1.msra.mxu0 0.0
        %347 = vmatprep.subr.mxu0 0.0
        %348 = vmatpush1.msra.mxu0 0.0
        %349 = vmatprep.subr.mxu0 0.0
        %350 = vmatpush1.msra.mxu0 0.0
        %351 = vmatprep.subr.mxu0 0.0
        %352 = vmatpush1.msra.mxu0 0.0
        %353 = vmatprep.subr.mxu0 0.0
        %354 = vmatpush1.msra.mxu0 0.0
        %355 = vmatprep.subr.mxu0 0.0
        %356 = vmatpush1.msra.mxu0 0.0
        %357 = vmatprep.subr.mxu0 0.0
        %358 = vmatpush1.msra.mxu0 0.0
        %359 = vmatprep.subr.mxu0 0.0
        %360 = vmatpush1.msra.mxu0 0.0
        %361 = vmatprep.subr.mxu0 0.0
        %362 = vmatpush1.msra.mxu0 0.0
        %363 = vmatprep.subr.mxu0 %v331
        %364 = vmatpush1.msra.mxu0 %v329
        %365 = vmatprep.subr.mxu0 0.0
        %366 = vmatpush2.msra.mxu0 0.0
        %367 = vmatprep.subr.mxu0 0.0
        %368 = vmatpush2.msra.mxu0 0.0
        %369 = vmatprep.subr.mxu0 0.0
        %370 = vmatpush2.msra.mxu0 0.0
        %371 = vmatprep.subr.mxu0 0.0
        %372 = vmatpush2.msra.mxu0 0.0
        %373 = vmatprep.subr.mxu0 0.0
        %374 = vmatpush2.msra.mxu0 0.0
        %375 = vmatprep.subr.mxu0 0.0
        %376 = vmatpush2.msra.mxu0 0.0
        %377 = vmatprep.subr.mxu0 0.0
        %378 = vmatpush2.msra.mxu0 0.0
        %379 = vmatprep.subr.mxu0 0.0
        %380 = vmatpush2.msra.mxu0 0.0
        %381 = vmatprep.subr.mxu0 0.0
        %382 = vmatpush2.msra.mxu0 0.0
        %383 = vmatprep.subr.mxu0 0.0
        %384 = vmatpush2.msra.mxu0 0.0
        %385 = vmatprep.subr.mxu0 0.0
        %386 = vmatpush2.msra.mxu0 0.0
        %387 = vmatprep.subr.mxu0 0.0
        %388 = vmatpush2.msra.mxu0 0.0
        %389 = vmatprep.subr.mxu0 0.0
        %390 = vmatpush2.msra.mxu0 0.0
        %391 = vmatprep.subr.mxu0 0.0
        %392 = vmatpush2.msra.mxu0 0.0
        %393 = vmatprep.subr.mxu0 0.0
        %394 = vmatpush2.msra.mxu0 0.0
        %395 = vmatprep.subr.mxu0 0.0
        %396 = vmatpush2.msra.mxu0 0.0
        %397 = vmatprep.mubr.f32.mxu0 0.0
        %398 = vmatmul.mubr.f32.gmra.mxu0 %v317
        %v399 = vpop.f32.mrf.mxu0
        %v400 = vadd.f32 %v296, %v399
        %v401 = vpop.f32.mrf.mxu0
        %v402 = vadd.f32 %v296, %v401
        %403 = vmatprep.mubr.f32.mxu0 0.0
        %404 = vmatmul.mubr.f32.gmra.mxu0 %v320
        %v405 = vpop.f32.mrf.mxu0
        %v406 = vadd.f32 %v301, %v405
        %v407 = vpop.f32.mrf.mxu0
        %v408 = vadd.f32 %v301, %v407
        %409 = vmatprep.mubr.f32.mxu0 0.0
        %410 = vmatmul.mubr.f32.gmra.mxu0 %v323
        %v411 = vpop.f32.mrf.mxu0
        %v412 = vadd.f32 %v306, %v411
        %v413 = vpop.f32.mrf.mxu0
        %v414 = vadd.f32 %v306, %v413
        %415 = vmatprep.mubr.f32.mxu0 0.0
        %416 = vmatmul.mubr.f32.gmra.mxu0 %v326
        %v417 = vpop.f32.mrf.mxu0
        %v418 = vadd.f32 %v311, %v417
        %v419 = vpop.f32.mrf.mxu0
        %v420 = vadd.f32 %v311, %v419
        %421 = vdwg.mxu0
        %vm422 = vcmp.gt.f32.partialorder %v400, 0.0
        %vm423 = vcmp.gt.f32.partialorder %v402, 0.0
        %vm424 = vcmp.gt.f32.partialorder %v406, 0.0
        %vm425 = vcmp.gt.f32.partialorder %v408, 0.0
        %vm426 = vcmp.gt.f32.partialorder %v412, 0.0
        %vm427 = vcmp.gt.f32.partialorder %v414, 0.0
        %vm428 = vcmp.gt.f32.partialorder %v418, 0.0
        %vm429 = vcmp.gt.f32.partialorder %v420, 0.0
        %v430 = vmul.f32 %v400, 0.2
        %v431 = vmul.f32 %v402, 0.2
        %v432 = vmul.f32 %v406, 0.2
        %v433 = vmul.f32 %v408, 0.2
        %v434 = vmul.f32 %v412, 0.2
        %v435 = vmul.f32 %v414, 0.2
        %v436 = vmul.f32 %v418, 0.2
        %v437 = vmul.f32 %v420, 0.2
        %v438 = vsel %vm422, %v400, %v430
        %v439 = vsel %vm423, %v402, %v431
        %v440 = vsel %vm424, %v406, %v432
        %v441 = vsel %vm425, %v408, %v433
        %v442 = vsel %vm426, %v412, %v434
        %v443 = vsel %vm427, %v414, %v435
        %v444 = vsel %vm428, %v418, %v436
        %v445 = vsel %vm429, %v420, %v437
        %v447 = vcombine.high %v292, %v292
        %v448 = vsel %vm328, %v292, 0
        %v450 = vsel %vm328, %v447, 0
        %452 = vmatprep.subr.mxu0 0.0
        %453 = vmatpush1.msra.mxu0 0.0
        %454 = vmatprep.subr.mxu0 0.0
        %455 = vmatpush1.msra.mxu0 0.0
        %456 = vmatprep.subr.mxu0 0.0
        %457 = vmatpush1.msra.mxu0 0.0
        %458 = vmatprep.subr.mxu0 0.0
        %459 = vmatpush1.msra.mxu0 0.0
        %460 = vmatprep.subr.mxu0 0.0
        %461 = vmatpush1.msra.mxu0 0.0
        %462 = vmatprep.subr.mxu0 0.0
        %463 = vmatpush1.msra.mxu0 0.0
        %464 = vmatprep.subr.mxu0 0.0
        %465 = vmatpush1.msra.mxu0 0.0
        %466 = vmatprep.subr.mxu0 0.0
        %467 = vmatpush1.msra.mxu0 0.0
        %468 = vmatprep.subr.mxu0 0.0
        %469 = vmatpush1.msra.mxu0 0.0
        %470 = vmatprep.subr.mxu0 0.0
        %471 = vmatpush1.msra.mxu0 0.0
        %472 = vmatprep.subr.mxu0 0.0
        %473 = vmatpush1.msra.mxu0 0.0
        %474 = vmatprep.subr.mxu0 0.0
        %475 = vmatpush1.msra.mxu0 0.0
        %476 = vmatprep.subr.mxu0 0.0
        %477 = vmatpush1.msra.mxu0 0.0
        %478 = vmatprep.subr.mxu0 0.0
        %479 = vmatpush1.msra.mxu0 0.0
        %480 = vmatprep.subr.mxu0 0.0
        %481 = vmatpush1.msra.mxu0 0.0
        %482 = vmatprep.subr.mxu0 %v450
        %483 = vmatpush1.msra.mxu0 %v448
        %484 = vmatprep.subr.mxu0 0.0
        %485 = vmatpush2.msra.mxu0 0.0
        %486 = vmatprep.subr.mxu0 0.0
        %487 = vmatpush2.msra.mxu0 0.0
        %488 = vmatprep.subr.mxu0 0.0
        %489 = vmatpush2.msra.mxu0 0.0
        %490 = vmatprep.subr.mxu0 0.0
        %491 = vmatpush2.msra.mxu0 0.0
        %492 = vmatprep.subr.mxu0 0.0
        %493 = vmatpush2.msra.mxu0 0.0
        %494 = vmatprep.subr.mxu0 0.0
        %495 = vmatpush2.msra.mxu0 0.0
        %496 = vmatprep.subr.mxu0 0.0
        %497 = vmatpush2.msra.mxu0 0.0
        %498 = vmatprep.subr.mxu0 0.0
        %499 = vmatpush2.msra.mxu0 0.0
        %500 = vmatprep.subr.mxu0 0.0
        %501 = vmatpush2.msra.mxu0 0.0
        %502 = vmatprep.subr.mxu0 0.0
        %503 = vmatpush2.msra.mxu0 0.0
        %504 = vmatprep.subr.mxu0 0.0
        %505 = vmatpush2.msra.mxu0 0.0
        %506 = vmatprep.subr.mxu0 0.0
        %507 = vmatpush2.msra.mxu0 0.0
        %508 = vmatprep.subr.mxu0 0.0
        %509 = vmatpush2.msra.mxu0 0.0
        %510 = vmatprep.subr.mxu0 0.0
        %511 = vmatpush2.msra.mxu0 0.0
        %512 = vmatprep.subr.mxu0 0.0
        %513 = vmatpush2.msra.mxu0 0.0
        %514 = vmatprep.subr.mxu0 0.0
        %515 = vmatpush2.msra.mxu0 0.0
        %516 = vmatprep.mubr.f32.mxu0 0.0
        %517 = vmatmul.mubr.f32.gmra.mxu0 %v317
        %v518 = vpop.f32.mrf.mxu0
        %v519 = vadd.f32 %v296, %v518
        %v520 = vpop.f32.mrf.mxu0
        %v521 = vadd.f32 %v296, %v520
        %522 = vmatprep.mubr.f32.mxu0 0.0
        %523 = vmatmul.mubr.f32.gmra.mxu0 %v320
        %v524 = vpop.f32.mrf.mxu0
        %v525 = vadd.f32 %v301, %v524
        %v526 = vpop.f32.mrf.mxu0
        %v527 = vadd.f32 %v301, %v526
        %528 = vmatprep.mubr.f32.mxu0 0.0
        %529 = vmatmul.mubr.f32.gmra.mxu0 %v323
        %v530 = vpop.f32.mrf.mxu0
        %v531 = vadd.f32 %v306, %v530
        %v532 = vpop.f32.mrf.mxu0
        %v533 = vadd.f32 %v306, %v532
        %534 = vmatprep.mubr.f32.mxu0 0.0
        %535 = vmatmul.mubr.f32.gmra.mxu0 %v326
        %v536 = vpop.f32.mrf.mxu0
        %v537 = vadd.f32 %v311, %v536
        %v538 = vpop.f32.mrf.mxu0
        %v539 = vadd.f32 %v311, %v538
        %540 = vdwg.mxu0
        %vm541 = vcmp.gt.f32.partialorder %v519, 0.0
        %vm542 = vcmp.gt.f32.partialorder %v521, 0.0
        %vm543 = vcmp.gt.f32.partialorder %v525, 0.0
        %vm544 = vcmp.gt.f32.partialorder %v527, 0.0
        %vm545 = vcmp.gt.f32.partialorder %v531, 0.0
        %vm546 = vcmp.gt.f32.partialorder %v533, 0.0
        %vm547 = vcmp.gt.f32.partialorder %v537, 0.0
        %vm548 = vcmp.gt.f32.partialorder %v539, 0.0
        %v549 = vmul.f32 %v519, 0.2
        %v550 = vmul.f32 %v521, 0.2
        %v551 = vmul.f32 %v525, 0.2
        %v552 = vmul.f32 %v527, 0.2
        %v553 = vmul.f32 %v531, 0.2
        %v554 = vmul.f32 %v533, 0.2
        %v555 = vmul.f32 %v537, 0.2
        %v556 = vmul.f32 %v539, 0.2
        %v557 = vsel %vm541, %v519, %v549
        %v558 = vsel %vm542, %v521, %v550
        %v559 = vsel %vm543, %v525, %v551
        %v560 = vsel %vm544, %v527, %v552
        %v561 = vsel %vm545, %v531, %v553
        %v562 = vsel %vm546, %v533, %v554
        %v563 = vsel %vm547, %v537, %v555
        %v564 = vsel %vm548, %v539, %v556
        %v565 = vsub.f32 %v438, %v557
        %v566 = vsub.f32 %v439, %v558
        %v567 = vsub.f32 %v440, %v559
        %v568 = vsub.f32 %v441, %v560
        %v569 = vsub.f32 %v442, %v561
        %v570 = vsub.f32 %v443, %v562
        %v571 = vsub.f32 %v444, %v563
        %v572 = vsub.f32 %v445, %v564
        %v573 = vmul.f32 %v565, %v565
        %v574 = vmul.f32 %v566, %v566
        %v575 = vmul.f32 %v567, %v567
        %v576 = vmul.f32 %v568, %v568
        %v577 = vmul.f32 %v569, %v569
        %v578 = vmul.f32 %v570, %v570
        %v579 = vmul.f32 %v571, %v571
        %v580 = vmul.f32 %v572, %v572
        %v581 = vadd.f32 %v573, 0.0
        %v582 = vadd.f32 %v575, 0.0
        %v583 = vadd.f32 %v577, 0.0
        %v584 = vadd.f32 %v579, 0.0
        %v585 = vadd.f32 %v581, %v574
        %v586 = vadd.f32 %v582, %v576
        %v587 = vadd.f32 %v583, %v578
        %v588 = vadd.f32 %v584, %v580
        %p589 = scmp.eq.s32.totalorder %s25, 0
        // Predicated region
        $region37: #{tpu_custom_call.1} parent=35 // pred_check
          %p590 = pneg %p589
        $region38: #{tpu_custom_call.1} parent=35 // pred_check_branch
          %592 = sbr.rel (%p590) target = $region40
        $region39: #{tpu_custom_call.1} parent=35 // pred_region
          %593 = vst [vmem:[%s258] sm:$0xff] %v585
          %594 = vst [vmem:[%s258 + $0x8] sm:$0xff] %v586
          %595 = vst [vmem:[%s258 + $0x10] sm:$0xff] %v587
          %596 = vst [vmem:[%s258 + $0x18] sm:$0xff] %v588
        $region40: #{tpu_custom_call.1} parent=35 // pred_fallthru
          _
        %p597 = scmp.ne.s32.totalorder %s25, 0
        // Predicated region
        $region41: #{tpu_custom_call.1} parent=35 // pred_check
          %p598 = pneg %p597
        $region42: #{tpu_custom_call.1} parent=35 // pred_check_branch
          %600 = sbr.rel (%p598) target = $region44
        $region43: #{tpu_custom_call.1} parent=35 // pred_region
          %v601 = vld [vmem:[%s258] sm:$0xff]
          %v602 = vld [vmem:[%s258 + $0x8] sm:$0xff]
          %v603 = vld [vmem:[%s258 + $0x10] sm:$0xff]
          %v604 = vld [vmem:[%s258 + $0x18] sm:$0xff]
          %v605 = vadd.f32 %v601, %v585
          %v606 = vadd.f32 %v602, %v586
          %v607 = vadd.f32 %v603, %v587
          %v608 = vadd.f32 %v604, %v588
          %609 = vst [vmem:[%s258] sm:$0xff] %v605
          %610 = vst [vmem:[%s258 + $0x8] sm:$0xff] %v606
          %611 = vst [vmem:[%s258 + $0x10] sm:$0xff] %v607
          %612 = vst [vmem:[%s258 + $0x18] sm:$0xff] %v608
        $region44: #{tpu_custom_call.1} parent=35 // pred_fallthru
          _
        %s613 = sand.u32 %s149, 1
        %s614 = scalar_lea.sflag [#allocation3], %s613
        %s615 = sand.u32 %s149, 1
        %s616 = smul.addr %s615, 32
        %s617 = scalar_lea.vmem [#allocation2], %s616
        // Predicated region
        $region45: #{tpu_custom_call.1} parent=35 // pred_check
          %p618 = pneg %p159
        $region46: #{tpu_custom_call.1} parent=35 // pred_check_branch
          %620 = sbr.rel (%p618) target = $region48
        $region47: #{tpu_custom_call.1} parent=35 // pred_region
          %s622 = ssub.s32 512, 512
          %623 = vsyncadd %s614, %s622
          %s624 = smul.addr %s24, 4
          %s625 = smul.addr %s23, 4
          %s626 = sadd.s32 %s624, %s625
          %s627 = smul.addr %s626, 128
          %s628 = scalar_lea.hbm %s4, %s627
          %s629 = sshll.u32 %s617, 4
          %s630 = int_to_ptr.vmem [resolvable:$true] %s629
          %635 = dma.vmem_to_hbm [thread:$0]  %s630, 512, %s628, %s614, 128, 128, 8
        $region48: #{tpu_custom_call.1} parent=35 // pred_fallthru
          _
      $region36: #{tpu_custom_call.1} parent=5 // pred_fallthru
        _
      %p636 = scmp.le.s32.totalorder 2, %s13
      // Predicated region
      $region49: #{tpu_custom_call.1} parent=5 // pred_check
        %p637 = pneg %p636
      $region50: #{tpu_custom_call.1} parent=5 // pred_check_branch
        %639 = sbr.rel (%p637) target = $region52
      $region51: #{tpu_custom_call.1} parent=5 // pred_region
        %s640 = ssub.s32 %s13, 2
        // Predicated region
        $region53: #{tpu_custom_call.1} parent=51 // pred_check
          %p641 = pneg %p165
        $region54: #{tpu_custom_call.1} parent=51 // pred_check_branch
          %643 = sbr.rel (%p641) target = $region56
        $region55: #{tpu_custom_call.1} parent=51 // pred_region
          %s644 = sand.u32 %s150, 1
          %s645 = scalar_lea.sflag [#allocation3], %s644
          %s646 = sand.u32 %s150, 1
          %s647 = smul.addr %s646, 32
          %s648 = scalar_lea.vmem [#allocation2], %s647
          %649 = dma.done %s645, 512
        $region56: #{tpu_custom_call.1} parent=51 // pred_fallthru
          _
      $region52: #{tpu_custom_call.1} parent=5 // pred_fallthru
        _
    $region6: #{tpu_custom_call.1} parent=1 // loop_footer
      %s17 = sadd.s32 1, %s13
    $region7: #{tpu_custom_call.1} parent=1 // loop_footer_branch
      %12 = sbr.rel target = $region3
    $region8: #{tpu_custom_call.1} parent=1 // loop_exit
      _
    %650 = vsyncpa [#allocation3], 1
    %s651 = scalar_lea.sflag [#allocation3], 1
    %652 = vsyncpa %s651, 1

</llo_original>
